<compile_context>
chip_gen: v7x
topology: tpu7x:2x2x1
jax: 0.10.0
libtpu: 0.0.40
codegen_flags: <defaults>
</compile_context>

<pallas_src>
import jax
import jax.numpy as jnp
from jax.experimental import pallas as pl
from jax.experimental.pallas import tpu as pltpu


def _round_up(x, m):
    return ((x + m - 1) // m) * m


def _cdiv(a, b):
    return -(-a // b)


def _is_v5e():
    try:
        kind = jax.devices()[0].device_kind.lower()
    except Exception:
        return False
    return ("v5 lite" in kind) or ("v5e" in kind) or ("v5litepod" in kind)


# --------------------------------------------------------------------------- #
# Kernel body (shared by the single-type and grouped paths)
# --------------------------------------------------------------------------- #
def _node_embedding_kernel(x_ref, w1_ref, b1_ref, w2_ref, b2_ref, o_ref):
    # Layer 1 on the MXU; f32 accumulation.  K = in_size (tiny) is fine: the MXU is
    # nowhere near the binding slot for this memory-bound kernel.
    h = jnp.dot(x_ref[...], w1_ref[...], preferred_element_type=jnp.float32)
    # f32 bias add on the VPU (hides under MXU/store slots); matches PyTorch's
    # post-accumulation f32 bias even when inputs/weights are bf16.
    h = h + b1_ref[...]
    # LeakyReLU (negative_slope = 0.01, PyTorch default): single vmax.
    h = jnp.maximum(h, 0.01 * h)
    # Layer 2 (cast activations to the weight dtype so bf16 mode stays on the bf16
    # MXU path; no-op in f32 mode), f32 accumulation + f32 bias.
    y = jnp.dot(h.astype(w2_ref.dtype), w2_ref[...], preferred_element_type=jnp.float32)
    y = y + b2_ref[...]
    o_ref[...] = y.astype(o_ref.dtype)


def _grouped_node_embedding_kernel(type_ids_ref, x_ref, w1_ref, b1_ref, w2_ref,
                                   b2_ref, o_ref):
    # type_ids_ref (scalar prefetch, SMEM) is only used by the index_maps.
    del type_ids_ref
    _node_embedding_kernel(x_ref, w1_ref, b1_ref, w2_ref, b2_ref, o_ref)


# --------------------------------------------------------------------------- #
# Single node type, batched over nodes
# --------------------------------------------------------------------------- #
def node_embedding_forward(x, params, *, tile_m=512, min_grid_steps=2, use_bf16=None):
    """Pallas implementation of NodeEmbedding.forward, batched over nodes.

    x: [batch, input_size] array (one row per observed node of this type).
    params:
      if input_size > 0: dict with w1 [in, H], b1 [1, H], w2 [H, out], b2 [1, out]
                         (weights stored pre-transposed as [in, out]).
      else:              dict with output_vec [out]  (learned constant embedding).
    Returns [batch, output_size] float32.
    """
    batch = int(x.shape[0])

    if "output_vec" in params:
        ov = jnp.asarray(params["output_vec"], jnp.float32)
        return jnp.broadcast_to(ov[None, :], (batch, int(ov.shape[0])))

    if use_bf16 is None:
        use_bf16 = _is_v5e()  # bf16-native MXU, ~0.8 TB/s HBM: halve the DMA bytes.
    compute_dtype = jnp.bfloat16 if use_bf16 else jnp.float32

    w1 = jnp.asarray(params["w1"], jnp.float32)
    b1 = jnp.asarray(params["b1"], jnp.float32).reshape(1, -1)
    w2 = jnp.asarray(params["w2"], jnp.float32)
    b2 = jnp.asarray(params["b2"], jnp.float32).reshape(1, -1)

    in_size = int(x.shape[1])
    hidden = int(w1.shape[1])
    out_size = int(w2.shape[1])
    h_pad = _round_up(hidden, 128)

    # Batch tile: at least `min_grid_steps` grid steps when the batch allows it
    # (keeps both v7x TensorCores busy + DMA/compute overlap), multiple of 8
    # sublanes, capped at tile_m (512 default: near HBM roofline on v6e/v5e; the
    # per-step footprint stays far below scoped VMEM on every generation).
    tm = _round_up(max(1, _cdiv(batch, max(1, int(min_grid_steps)))), 8)
    tm = max(8, min(int(tile_m), tm))
    b_pad = _round_up(max(batch, 1), tm)

    # x goes in UNPADDED along features (last-dim block == full array dim); only the
    # batch is zero-padded to a whole number of tiles when needed.
    if b_pad == batch:
        x_in = x.astype(compute_dtype)
    else:
        x_in = jnp.zeros((b_pad, in_size), compute_dtype).at[:batch].set(
            x.astype(compute_dtype))

    # Weights: hidden padded to a lane-dense multiple of 128 (no-op at hidden=256);
    # biases stay f32.  All four are VMEM-resident across the grid (constant maps).
    if h_pad == hidden:
        w1_p = w1.astype(compute_dtype)
        w2_p = w2.astype(compute_dtype)
        b1_p = b1
    else:
        w1_p = jnp.zeros((in_size, h_pad), compute_dtype).at[:, :hidden].set(
            w1.astype(compute_dtype))
        w2_p = jnp.zeros((h_pad, out_size), compute_dtype).at[:hidden, :].set(
            w2.astype(compute_dtype))
        b1_p = jnp.zeros((1, h_pad), jnp.float32).at[:, :hidden].set(b1)
    b2_p = b2

    grid = (b_pad // tm,)
    itemsize = jnp.dtype(compute_dtype).itemsize
    cost = pl.CostEstimate(
        flops=2 * b_pad * (in_size * h_pad + h_pad * out_size),
        transcendentals=0,
        bytes_accessed=(b_pad * in_size + in_size * h_pad + h_pad * out_size) * itemsize
        + (h_pad + out_size) * 4
        + b_pad * out_size * 4,
    )

    out = pl.pallas_call(
        _node_embedding_kernel,
        out_shape=jax.ShapeDtypeStruct((b_pad, out_size), jnp.float32),
        grid_spec=pl.GridSpec(
            grid=grid,
            in_specs=[
                # x: tiled along the batch axis, features unpadded.
                pl.BlockSpec((tm, in_size), lambda i: (i, 0)),
                # Weights / biases: constant index_map -> DMA'd once, VMEM-resident.
                pl.BlockSpec((in_size, h_pad), lambda i: (0, 0)),
                pl.BlockSpec((1, h_pad), lambda i: (0, 0)),
                pl.BlockSpec((h_pad, out_size), lambda i: (0, 0)),
                pl.BlockSpec((1, out_size), lambda i: (0, 0)),
            ],
            # out_size real lanes written directly (masked vst accepted: cheaper than
            # the 4x output-byte inflation of padding to 128 lanes + wrapper slice).
            out_specs=pl.BlockSpec((tm, out_size), lambda i: (i, 0)),
        ),
        compiler_params=pltpu.CompilerParams(
            # Batch axis is embarrassingly parallel -> megacore sharding on v7x.
            dimension_semantics=("parallel",),
        ),
        cost_estimate=cost,
    )(x_in, w1_p, b1_p, w2_p, b2_p)

    return out if b_pad == batch else out[:batch]


# --------------------------------------------------------------------------- #
# Grouped path: all MLP node types in ONE pallas_call (MoE-style grouped matmul)
# --------------------------------------------------------------------------- #
def grouped_node_embedding_forward(xs, params_list, *, tile_m=128, use_bf16=None):
    """Embed nodes of many types with one launch.

    xs:          list of [n_t, input_size_t] arrays, one per node type.
    params_list: matching list of NodeEmbedding param dicts (see above).  All MLP
                 types must share hidden_size and output_size (true for
                 GrammarEncoder: every NodeEmbedding outputs embedding_size).
    Returns a list of [n_t, output_size] float32 arrays in the same order.
    """
    assert len(xs) == len(params_list)
    if use_bf16 is None:
        use_bf16 = _is_v5e()
    compute_dtype = jnp.bfloat16 if use_bf16 else jnp.float32

    results = [None] * len(xs)
    mlp_idx = []
    for i, (x, p) in enumerate(zip(xs, params_list)):
        n_i = int(x.shape[0])
        if "output_vec" in p:
            ov = jnp.asarray(p["output_vec"], jnp.float32)
            results[i] = jnp.broadcast_to(ov[None, :], (n_i, int(ov.shape[0])))
        elif n_i > 0:
            mlp_idx.append(i)
        else:
            results[i] = jnp.zeros((0, int(jnp.asarray(p["w2"]).shape[1])), jnp.float32)
    if not mlp_idx:
        return results

    hidden = int(jnp.asarray(params_list[mlp_idx[0]]["w1"]).shape[1])
    out_size = int(jnp.asarray(params_list[mlp_idx[0]]["w2"]).shape[1])
    h_pad = _round_up(hidden, 128)
    in_max = max(int(xs[i].shape[1]) for i in mlp_idx)

    max_n = max(int(xs[i].shape[0]) for i in mlp_idx)
    tm = max(8, _round_up(min(int(tile_m), max_n), 8))

    num_types = len(mlp_idx)
    w1_all = jnp.zeros((num_types, in_max, h_pad), compute_dtype)
    b1_all = jnp.zeros((num_types, 1, h_pad), jnp.float32)
    w2_all = jnp.zeros((num_types, h_pad, out_size), compute_dtype)
    b2_all = jnp.zeros((num_types, 1, out_size), jnp.float32)

    x_rows, tile_type, row_spans = [], [], []
    row0 = 0
    for t, i in enumerate(mlp_idx):
        p = params_list[i]
        w1 = jnp.asarray(p["w1"], jnp.float32)
        b1 = jnp.asarray(p["b1"], jnp.float32).reshape(-1)
        w2 = jnp.asarray(p["w2"], jnp.float32)
        b2 = jnp.asarray(p["b2"], jnp.float32).reshape(-1)
        in_t = int(w1.shape[0])
        assert int(w1.shape[1]) == hidden and int(w2.shape[1]) == out_size, \
            "grouped path requires a shared hidden/output size across node types"
        w1_all = w1_all.at[t, :in_t, :hidden].set(w1.astype(compute_dtype))
        b1_all = b1_all.at[t, 0, :hidden].set(b1)
        w2_all = w2_all.at[t, :hidden, :].set(w2.astype(compute_dtype))
        b2_all = b2_all.at[t, 0, :].set(b2)

        n_t = int(xs[i].shape[0])
        n_t_pad = _round_up(n_t, tm)
        x_t = jnp.zeros((n_t_pad, in_max), compute_dtype)
        x_t = x_t.at[:n_t, :in_t].set(jnp.asarray(xs[i]).astype(compute_dtype))
        x_rows.append(x_t)
        tile_type.extend([t] * (n_t_pad // tm))
        row_spans.append((row0, n_t))
        row0 += n_t_pad

    x_all = jnp.concatenate(x_rows, axis=0)
    type_ids = jnp.asarray(tile_type, jnp.int32)
    num_tiles = int(type_ids.shape[0])

    out = pl.pallas_call(
        _grouped_node_embedding_kernel,
        out_shape=jax.ShapeDtypeStruct((int(x_all.shape[0]), out_size), jnp.float32),
        grid_spec=pltpu.PrefetchScalarGridSpec(
            num_scalar_prefetch=1,  # tile -> type-id table, in SMEM before the grid
            grid=(num_tiles,),
            in_specs=[
                pl.BlockSpec((tm, in_max), lambda g, tid: (g, 0)),
                # Per-type weight slabs selected by the scalar-prefetched type id;
                # leading type dim squeezed so the kernel body sees 2-D tiles.
                pl.BlockSpec((None, in_max, h_pad), lambda g, tid: (tid[g], 0, 0)),
                pl.BlockSpec((None, 1, h_pad), lambda g, tid: (tid[g], 0, 0)),
                pl.BlockSpec((None, h_pad, out_size), lambda g, tid: (tid[g], 0, 0)),
                pl.BlockSpec((None, 1, out_size), lambda g, tid: (tid[g], 0, 0)),
            ],
            out_specs=pl.BlockSpec((tm, out_size), lambda g, tid: (g, 0)),
        ),
        compiler_params=pltpu.CompilerParams(dimension_semantics=("parallel",)),
    )(type_ids, x_all, w1_all, b1_all, w2_all, b2_all)

    for (start, n_t), i in zip(row_spans, mlp_idx):
        results[i] = out[start:start + n_t, :]
    return results


# --------------------------------------------------------------------------- #
# Parameter init + pure-JAX reference
# --------------------------------------------------------------------------- #
def init_node_embedding_params(key, input_size, output_size, hidden_size=256):
    """Deterministic synthetic parameter init matching the module's shapes.

    Mimics PyTorch Linear init scale (U[-1/sqrt(fan_in), 1/sqrt(fan_in)]).
    Weights are stored transposed as [in, out] for the kernel layout.
    """
    if input_size == 0:
        k = jax.random.fold_in(key, 99)
        return {"output_vec": jax.random.normal(k, (output_size,), jnp.float32)}

    k1, k2, k3, k4 = jax.random.split(key, 4)
    lim1 = 1.0 / jnp.sqrt(jnp.float32(input_size))
    lim2 = 1.0 / jnp.sqrt(jnp.float32(hidden_size))
    w1 = jax.random.uniform(k1, (input_size, hidden_size), jnp.float32, -lim1, lim1)
    b1 = jax.random.uniform(k2, (1, hidden_size), jnp.float32, -lim1, lim1)
    w2 = jax.random.uniform(k3, (hidden_size, output_size), jnp.float32, -lim2, lim2)
    b2 = jax.random.uniform(k4, (1, output_size), jnp.float32, -lim2, lim2)
    return {"w1": w1, "b1": b1, "w2": w2, "b2": b2}


def _reference_forward(x, params):
    if "output_vec" in params:
        return jnp.broadcast_to(params["output_vec"][None, :],
                                (x.shape[0], params["output_vec"].shape[0]))
    h = x @ params["w1"] + params["b1"]
    h = jnp.where(h >= 0, h, 0.01 * h)
    return h @ params["w2"] + params["b2"]


if __name__ == "__main__":
    key = jax.random.PRNGKey(0)

    # Shapes consistent with the module: nodes with 4 continuous variables,
    # embedding_size=32, default hidden_size=256.
    input_size, output_size, hidden_size = 4, 32, 256
    pkey, xkey, x2key, gkey = jax.random.split(key, 4)
    params = init_node_embedding_params(pkey, input_size, output_size, hidden_size)

    # (a) Amortized batch: many same-type nodes in one call; the batch grid is
    #     forced to >= 2 steps so both v7x TensorCores get work.
    batch = 200
    x = jax.random.normal(xkey, (batch, input_size), jnp.float32)
    out = jax.block_until_ready(node_embedding_forward(x, params, use_bf16=False))
    ref = _reference_forward(x, params)
    assert out.shape == (batch, output_size)
    assert jnp.allclose(out, ref, atol=1e-4, rtol=1e-4)

    # (b) Tiny batch (original per-call shape) still works (single grid step).
    x_small = jax.random.normal(x2key, (8, input_size), jnp.float32)
    out_small = jax.block_until_ready(
        node_embedding_forward(x_small, params, use_bf16=False))
    ref_small = _reference_forward(x_small, params)
    assert out_small.shape == (8, output_size)
    assert jnp.allclose(out_small, ref_small, atol=1e-4, rtol=1e-4)

    # (c) bf16 compute path (v5e default): f32 accumulation + f32 bias adds.
    out_bf16 = jax.block_until_ready(node_embedding_forward(x, params, use_bf16=True))
    assert jnp.allclose(out_bf16, ref, atol=5e-2, rtol=5e-2)

    # (d) input_size == 0 branch: learned constant, broadcast to the batch.
    params0 = init_node_embedding_params(pkey, 0, output_size, hidden_size)
    x0 = jnp.zeros((5, 0), jnp.float32)
    out0 = jax.block_until_ready(node_embedding_forward(x0, params0))
    assert out0.shape == (5, output_size)
    assert jnp.allclose(
        out0, jnp.broadcast_to(params0["output_vec"][None, :], (5, output_size)))

    # (e) Grouped multi-type path: three MLP node types with different input sizes
    #     plus one parameter-only type, all embedded with ONE pallas_call.
    tkeys = jax.random.split(gkey, 8)
    type_cfg = [(4, 37), (7, 12), (2, 53), (0, 5)]  # (input_size, node_count)
    xs, ps = [], []
    for k_t, (in_sz, n_t) in enumerate(type_cfg):
        ps.append(init_node_embedding_params(tkeys[k_t], in_sz, output_size, hidden_size))
        xs.append(jax.random.normal(tkeys[4 + k_t], (n_t, in_sz), jnp.float32))
    outs = grouped_node_embedding_forward(xs, ps, tile_m=8, use_bf16=False)
    outs = [jax.block_until_ready(o) for o in outs]
    for o_t, x_t, p_t in zip(outs, xs, ps):
        r_t = _reference_forward(x_t, p_t)
        assert o_t.shape == r_t.shape
        assert jnp.allclose(o_t, r_t, atol=1e-4, rtol=1e-4)

    print("KERNEL_OK")
</pallas_src>

<mosaic_0001>
module attributes {stable_mosaic.version = 11 : i64} {
  func.func @_node_embedding_kernel(%arg0: i32, %arg1: memref<104x4xf32, #tpu.memory_space<vmem>>, %arg2: memref<4x256xf32, #tpu.memory_space<vmem>>, %arg3: memref<1x256xf32, #tpu.memory_space<vmem>>, %arg4: memref<256x32xf32, #tpu.memory_space<vmem>>, %arg5: memref<1x32xf32, #tpu.memory_space<vmem>>, %arg6: memref<104x32xf32, #tpu.memory_space<vmem>>) attributes {dimension_semantics = [#tpu.dimension_semantics<parallel>], iteration_bounds = array<i64: 2>, scalar_prefetch = 0 : i64, scratch_operands = 0 : i64, tpu.core_type = #tpu.core_type<tc>, window_params = [{transform_indices = @transform_0, window_bounds = array<i64: 104, 4>}, {pipeline_mode = #tpu.pipeline_mode<synchronous>, transform_indices = @transform_1, window_bounds = array<i64: 4, 256>}, {pipeline_mode = #tpu.pipeline_mode<synchronous>, transform_indices = @transform_2, window_bounds = array<i64: 1, 256>}, {pipeline_mode = #tpu.pipeline_mode<synchronous>, transform_indices = @transform_3, window_bounds = array<i64: 256, 32>}, {pipeline_mode = #tpu.pipeline_mode<synchronous>, transform_indices = @transform_4, window_bounds = array<i64: 1, 32>}, {transform_indices = @transform_5, window_bounds = array<i64: 104, 32>}]} {
    %c0 = arith.constant 0 : index
    %c0_0 = arith.constant 0 : index
    %0 = vector.load %arg1[%c0, %c0_0] : memref<104x4xf32, #tpu.memory_space<vmem>>, vector<104x4xf32>
    %c0_1 = arith.constant 0 : index
    %c0_2 = arith.constant 0 : index
    %1 = vector.load %arg2[%c0_1, %c0_2] : memref<4x256xf32, #tpu.memory_space<vmem>>, vector<4x256xf32>
    %cst = arith.constant dense<0.000000e+00> : vector<104x256xf32>
    %2 = tpu.matmul %0, %1, %cst {dimension_numbers = #tpu.dot_dimension_numbers<[1], [0], [0], [1], [0, 0, 1, 1], [], []>} : vector<104x4xf32>, vector<4x256xf32>, vector<104x256xf32> -> vector<104x256xf32>
    %c0_3 = arith.constant 0 : index
    %c0_4 = arith.constant 0 : index
    %3 = vector.load %arg3[%c0_3, %c0_4] : memref<1x256xf32, #tpu.memory_space<vmem>>, vector<1x256xf32>
    %4 = vector.broadcast %3 : vector<1x256xf32> to vector<104x256xf32>
    %5 = arith.addf %2, %4 : vector<104x256xf32>
    %cst_5 = arith.constant 0.00999999977 : f32
    %6 = vector.broadcast %cst_5 : f32 to vector<104x256xf32>
    %7 = arith.mulf %6, %5 : vector<104x256xf32>
    %8 = arith.maximumf %5, %7 : vector<104x256xf32>
    %c0_6 = arith.constant 0 : index
    %c0_7 = arith.constant 0 : index
    %9 = vector.load %arg4[%c0_6, %c0_7] : memref<256x32xf32, #tpu.memory_space<vmem>>, vector<256x32xf32>
    %cst_8 = arith.constant dense<0.000000e+00> : vector<104x32xf32>
    %10 = tpu.matmul %8, %9, %cst_8 {dimension_numbers = #tpu.dot_dimension_numbers<[1], [0], [0], [1], [0, 0, 1, 1], [], []>} : vector<104x256xf32>, vector<256x32xf32>, vector<104x32xf32> -> vector<104x32xf32>
    %c0_9 = arith.constant 0 : index
    %c0_10 = arith.constant 0 : index
    %11 = vector.load %arg5[%c0_9, %c0_10] : memref<1x32xf32, #tpu.memory_space<vmem>>, vector<1x32xf32>
    %12 = vector.broadcast %11 : vector<1x32xf32> to vector<104x32xf32>
    %13 = arith.addf %10, %12 : vector<104x32xf32>
    %c0_11 = arith.constant 0 : index
    %c0_12 = arith.constant 0 : index
    %14 = vector.load %arg6[%c0_11, %c0_12] : memref<104x32xf32, #tpu.memory_space<vmem>>, vector<104x32xf32>
    tpu.vector_store %arg6[%c0_11, %c0_12], %13 {strides = array<i32>} : memref<104x32xf32, #tpu.memory_space<vmem>>, vector<104x32xf32>,
    return
  }
  func.func @transform_0(%arg0: i32) -> (i32, i32) {
    %c0_i32 = arith.constant 0 : i32
    %c0_i32_0 = arith.constant 0 : i32
    return %arg0, %c0_i32 : i32, i32
  }
  func.func @transform_1(%arg0: i32) -> (i32, i32) {
    %c0_i32 = arith.constant 0 : i32
    %c0_i32_0 = arith.constant 0 : i32
    %c0_i32_1 = arith.constant 0 : i32
    return %c0_i32, %c0_i32_0 : i32, i32
  }
  func.func @transform_2(%arg0: i32) -> (i32, i32) {
    %c0_i32 = arith.constant 0 : i32
    %c0_i32_0 = arith.constant 0 : i32
    %c0_i32_1 = arith.constant 0 : i32
    return %c0_i32, %c0_i32_0 : i32, i32
  }
  func.func @transform_3(%arg0: i32) -> (i32, i32) {
    %c0_i32 = arith.constant 0 : i32
    %c0_i32_0 = arith.constant 0 : i32
    %c0_i32_1 = arith.constant 0 : i32
    return %c0_i32, %c0_i32_0 : i32, i32
  }
  func.func @transform_4(%arg0: i32) -> (i32, i32) {
    %c0_i32 = arith.constant 0 : i32
    %c0_i32_0 = arith.constant 0 : i32
    %c0_i32_1 = arith.constant 0 : i32
    return %c0_i32, %c0_i32_0 : i32, i32
  }
  func.func @transform_5(%arg0: i32) -> (i32, i32) {
    %c0_i32 = arith.constant 0 : i32
    %c0_i32_0 = arith.constant 0 : i32
    return %arg0, %c0_i32 : i32, i32
  }
}

</mosaic_0001>

<llo_original>
// kernel: tpu_custom_call.1
$region0: #{tpu_custom_call.1}
  #allocation0 [shape = 'u32[]', space=smem, size = 0x4, offset = 0x4, fixed_abs, tag = 'smem constant byte address 0x4 - core index']
  #allocation1 [shape = 'u32[144,128]{1,0:T(1,128)}', space=vmem, size = 0x12000, scoped, tag = 'internal scratch']
  %s0 = inlined_call_operand.vmem [shape: f32[208,4], index: 0, kind: input, shape index: {}]
  %s1 = inlined_call_operand.vmem [shape: f32[4,256], index: 1, kind: input, shape index: {}]
  %s2 = inlined_call_operand.vmem [shape: f32[1,256], index: 2, kind: input, shape index: {}]
  %s3 = inlined_call_operand.vmem [shape: f32[256,32], index: 3, kind: input, shape index: {}]
  %s4 = inlined_call_operand.vmem [shape: f32[1,32], index: 4, kind: input, shape index: {}]
  %s5 = inlined_call_operand.vmem [shape: f32[208,32], index: 5, kind: output, shape index: {}]
  %s6 = sld [smem:[#allocation0]]
  $region53: #{tpu_custom_call.1} parent=0
    _
  %s8 = ssub.s32 1, %s6
  %s9 = scalar_select 0, %s8, %s6
  loop: start=0, step=1, limit=4
  $region2: #{tpu_custom_call.1} parent=0 // loop_pre_header
    _
  $region3: #{tpu_custom_call.1} parent=0 // loop_header
    %s11 = sphi 0, %s15
    %p12 = scmp.ge.s32.totalorder %s11, 4
    %s21 = sphi 0, %s23
    %s24 = sphi 0, %s21
    %s25 = sphi 0, %s24
    %s41 = sphi 0, %s25
    %s45 = sphi 0, %s45
    %s47 = sphi 0, %s45
    %s48 = sphi 0, %s47
    %s62 = sphi 0, %s48
    %s66 = sphi 0, %s66
    %s68 = sphi 0, %s66
    %s69 = sphi 0, %s68
    %s83 = sphi 0, %s69
    %s87 = sphi 0, %s87
    %s89 = sphi 0, %s87
    %s90 = sphi 0, %s89
    %s104 = sphi 0, %s90
    %s108 = sphi 0, %s108
    %s110 = sphi 0, %s108
    %s111 = sphi 0, %s110
    %s125 = sphi 0, %s111
    %s131 = sphi 0, %s133
    %s134 = sphi 0, %s131
    %s135 = sphi 0, %s134
    %s151 = sphi 0, %s135
  $region4: #{tpu_custom_call.1} parent=0 // loop_header_branch
    %14 = sbr.rel (%p12) target = $region8
  $region5: #{tpu_custom_call.1} parent=0 // loop_body
    %s16 = ssub.s32 %s11, 1
    %s17 = ssub.s32 %s11, 2
    %s18 = sadd.s32 %s11, 1
    %s19 = ssub.s32 %s11, %s18
    %p20 = scmp.eq.s32.totalorder %s19, 0
    %s22 = sadd.s32 %s21, 1
    %s23 = scalar_select %p20, %s21, %s22
    %p26 = pneg %p20
    %p27 = scmp.eq.s32.totalorder %s11, 1
    %p28 = por %p26, %p27
    %p29 = scmp.ne.s32.totalorder %s21, %s24
    %p30 = scmp.eq.s32.totalorder %s11, 0
    %p31 = por %p29, %p30
    %p32 = scmp.ne.s32.totalorder %s21, %s24
    %p33 = scmp.eq.s32.totalorder %s16, 1
    %p34 = por %p32, %p33
    %p35 = scmp.ne.s32.totalorder %s24, %s25
    %p36 = scmp.eq.s32.totalorder %s16, 0
    %p37 = por %p35, %p36
    %p38 = scmp.ne.s32.totalorder %s24, %s25
    %p39 = scmp.eq.s32.totalorder %s17, 1
    %p40 = por %p38, %p39
    %p42 = scmp.ne.s32.totalorder %s25, %s41
    %p43 = scmp.eq.s32.totalorder %s17, 0
    %p44 = por %p42, %p43
    %s46 = sadd.s32 %s45, 1
    %p49 = scmp.eq.s32.totalorder %s11, 1
    %p50 = scmp.ne.s32.totalorder %s45, %s47
    %p51 = scmp.eq.s32.totalorder %s11, 0
    %p52 = por %p50, %p51
    %p53 = scmp.ne.s32.totalorder %s45, %s47
    %p54 = scmp.eq.s32.totalorder %s16, 1
    %p55 = por %p53, %p54
    %p56 = scmp.ne.s32.totalorder %s47, %s48
    %p57 = scmp.eq.s32.totalorder %s16, 0
    %p58 = por %p56, %p57
    %p59 = scmp.ne.s32.totalorder %s47, %s48
    %p60 = scmp.eq.s32.totalorder %s17, 1
    %p61 = por %p59, %p60
    %p63 = scmp.ne.s32.totalorder %s48, %s62
    %p64 = scmp.eq.s32.totalorder %s17, 0
    %p65 = por %p63, %p64
    %s67 = sadd.s32 %s66, 1
    %p70 = scmp.eq.s32.totalorder %s11, 1
    %p71 = scmp.ne.s32.totalorder %s66, %s68
    %p72 = scmp.eq.s32.totalorder %s11, 0
    %p73 = por %p71, %p72
    %p74 = scmp.ne.s32.totalorder %s66, %s68
    %p75 = scmp.eq.s32.totalorder %s16, 1
    %p76 = por %p74, %p75
    %p77 = scmp.ne.s32.totalorder %s68, %s69
    %p78 = scmp.eq.s32.totalorder %s16, 0
    %p79 = por %p77, %p78
    %p80 = scmp.ne.s32.totalorder %s68, %s69
    %p81 = scmp.eq.s32.totalorder %s17, 1
    %p82 = por %p80, %p81
    %p84 = scmp.ne.s32.totalorder %s69, %s83
    %p85 = scmp.eq.s32.totalorder %s17, 0
    %p86 = por %p84, %p85
    %s88 = sadd.s32 %s87, 1
    %p91 = scmp.eq.s32.totalorder %s11, 1
    %p92 = scmp.ne.s32.totalorder %s87, %s89
    %p93 = scmp.eq.s32.totalorder %s11, 0
    %p94 = por %p92, %p93
    %p95 = scmp.ne.s32.totalorder %s87, %s89
    %p96 = scmp.eq.s32.totalorder %s16, 1
    %p97 = por %p95, %p96
    %p98 = scmp.ne.s32.totalorder %s89, %s90
    %p99 = scmp.eq.s32.totalorder %s16, 0
    %p100 = por %p98, %p99
    %p101 = scmp.ne.s32.totalorder %s89, %s90
    %p102 = scmp.eq.s32.totalorder %s17, 1
    %p103 = por %p101, %p102
    %p105 = scmp.ne.s32.totalorder %s90, %s104
    %p106 = scmp.eq.s32.totalorder %s17, 0
    %p107 = por %p105, %p106
    %s109 = sadd.s32 %s108, 1
    %p112 = scmp.eq.s32.totalorder %s11, 1
    %p113 = scmp.ne.s32.totalorder %s108, %s110
    %p114 = scmp.eq.s32.totalorder %s11, 0
    %p115 = por %p113, %p114
    %p116 = scmp.ne.s32.totalorder %s108, %s110
    %p117 = scmp.eq.s32.totalorder %s16, 1
    %p118 = por %p116, %p117
    %p119 = scmp.ne.s32.totalorder %s110, %s111
    %p120 = scmp.eq.s32.totalorder %s16, 0
    %p121 = por %p119, %p120
    %p122 = scmp.ne.s32.totalorder %s110, %s111
    %p123 = scmp.eq.s32.totalorder %s17, 1
    %p124 = por %p122, %p123
    %p126 = scmp.ne.s32.totalorder %s111, %s125
    %p127 = scmp.eq.s32.totalorder %s17, 0
    %p128 = por %p126, %p127
    %s129 = ssub.s32 %s11, %s18
    %p130 = scmp.eq.s32.totalorder %s129, 0
    %s132 = sadd.s32 %s131, 1
    %s133 = scalar_select %p130, %s131, %s132
    %p136 = pneg %p130
    %p137 = scmp.eq.s32.totalorder %s11, 1
    %p138 = por %p136, %p137
    %p139 = scmp.ne.s32.totalorder %s131, %s134
    %p140 = scmp.eq.s32.totalorder %s11, 0
    %p141 = por %p139, %p140
    %p142 = scmp.ne.s32.totalorder %s131, %s134
    %p143 = scmp.eq.s32.totalorder %s16, 1
    %p144 = por %p142, %p143
    %p145 = scmp.ne.s32.totalorder %s134, %s135
    %p146 = scmp.eq.s32.totalorder %s16, 0
    %p147 = por %p145, %p146
    %p148 = scmp.ne.s32.totalorder %s134, %s135
    %p149 = scmp.eq.s32.totalorder %s17, 1
    %p150 = por %p148, %p149
    %p152 = scmp.ne.s32.totalorder %s135, %s151
    %p153 = scmp.eq.s32.totalorder %s17, 0
    %p154 = por %p152, %p153
    %p155 = scmp.le.s32.totalorder 1, %s11
    %p156 = scmp.lt.s32.totalorder %s11, 3
    %p157 = pnand %p155, %p156
    %p158 = pneg %p157
    // Predicated region
    $region9: #{tpu_custom_call.1} parent=5 // pred_check
      _
    $region10: #{tpu_custom_call.1} parent=5 // pred_check_branch
      %160 = sbr.rel (%p157) target = $region12
    $region11: #{tpu_custom_call.1} parent=5 // pred_region
      %s161 = ssub.s32 %s11, 1
      // Predicated region
      $region13: #{tpu_custom_call.1} parent=11 // pred_check
        %p162 = pneg %p58
      $region14: #{tpu_custom_call.1} parent=11 // pred_check_branch
        %164 = sbr.rel (%p162) target = $region16
      $region15: #{tpu_custom_call.1} parent=11 // pred_region
        _
      $region16: #{tpu_custom_call.1} parent=11 // pred_fallthru
        _
      // Predicated region
      $region17: #{tpu_custom_call.1} parent=11 // pred_check
        %p165 = pneg %p79
      $region18: #{tpu_custom_call.1} parent=11 // pred_check_branch
        %167 = sbr.rel (%p165) target = $region20
      $region19: #{tpu_custom_call.1} parent=11 // pred_region
        _
      $region20: #{tpu_custom_call.1} parent=11 // pred_fallthru
        _
      // Predicated region
      $region21: #{tpu_custom_call.1} parent=11 // pred_check
        %p168 = pneg %p100
      $region22: #{tpu_custom_call.1} parent=11 // pred_check_branch
        %170 = sbr.rel (%p168) target = $region24
      $region23: #{tpu_custom_call.1} parent=11 // pred_region
        _
      $region24: #{tpu_custom_call.1} parent=11 // pred_fallthru
        _
      // Predicated region
      $region25: #{tpu_custom_call.1} parent=11 // pred_check
        %p171 = pneg %p121
      $region26: #{tpu_custom_call.1} parent=11 // pred_check_branch
        %173 = sbr.rel (%p171) target = $region28
      $region27: #{tpu_custom_call.1} parent=11 // pred_region
        _
      $region28: #{tpu_custom_call.1} parent=11 // pred_fallthru
        _
    $region12: #{tpu_custom_call.1} parent=5 // pred_fallthru
      _
    %p174 = scmp.lt.s32.totalorder %s11, 2
    // Predicated region
    $region29: #{tpu_custom_call.1} parent=5 // pred_check
      %p175 = pneg %p174
    $region30: #{tpu_custom_call.1} parent=5 // pred_check_branch
      %177 = sbr.rel (%p175) target = $region32
    $region31: #{tpu_custom_call.1} parent=5 // pred_region
      // Predicated region
      $region33: #{tpu_custom_call.1} parent=31 // pred_check
        %p178 = pneg %p31
      $region34: #{tpu_custom_call.1} parent=31 // pred_check_branch
        %180 = sbr.rel (%p178) target = $region36
      $region35: #{tpu_custom_call.1} parent=31 // pred_region
        %s181 = smul.u32 13, %s11
        %p182 = scmp.lt.s32.totalorder %s181, 25
        %s183 = scalar_select %p182, %s181, 25
        %s184 = smul.addr %s183, 8
        %s185 = scalar_lea.vmem %s0, %s184
        %s186 = smul.u32 13, %s11
      $region36: #{tpu_custom_call.1} parent=31 // pred_fallthru
        _
    $region32: #{tpu_custom_call.1} parent=5 // pred_fallthru
      _
    %p187 = scmp.le.s32.totalorder 1, %s11
    %p188 = scmp.lt.s32.totalorder %s11, 3
    %p189 = pnand %p187, %p188
    %p190 = pneg %p189
    // Predicated region
    $region37: #{tpu_custom_call.1} parent=5 // pred_check
      _
    $region38: #{tpu_custom_call.1} parent=5 // pred_check_branch
      %192 = sbr.rel (%p189) target = $region40
    $region39: #{tpu_custom_call.1} parent=5 // pred_region
      %s193 = ssub.s32 %s11, 1
      %s194 = smul.u32 13, %s16
      %p195 = scmp.lt.s32.totalorder %s194, 25
      %s196 = scalar_select %p195, %s194, 25
      %s197 = smul.addr %s196, 8
      %s198 = scalar_lea.vmem %s0, %s197
      %p199 = pneg %p37
      %p200 = pneg %p34
      %p201 = pneg %p58
      %p202 = pneg %p55
      %p203 = pneg %p79
      %p204 = pneg %p76
      %p205 = pneg %p100
      %p206 = pneg %p97
      %p207 = pneg %p121
      %p208 = pneg %p118
      %p209 = pneg %p147
      %p210 = pneg %p144
      %s211 = smul.u32 13, %s16
      %p212 = scmp.lt.s32.totalorder %s211, 25
      %s213 = scalar_select %p212, %s211, 25
      %s214 = smul.addr %s213, 8
      %s215 = scalar_lea.vmem %s5, %s214
      %s216 = smul.u32 13, %s16
      %p217 = scmp.lt.s32.totalorder %s216, 25
      %s218 = scalar_select %p217, %s216, 25
      %s219 = smul.addr %s218, 8
      %s220 = scalar_lea.vmem %s0, %s219
      %s221 = smul.u32 13, %s16
      %s222 = smul.u32 13, %s16
      %p223 = scmp.lt.s32.totalorder %s222, 25
      %s224 = scalar_select %p223, %s222, 25
      %s225 = smul.addr %s224, 8
      %s226 = scalar_lea.vmem %s5, %s225
      %s227 = smul.u32 13, %s16
      %v228 = vld [vmem:[%s220] sm:$0xff]
      %v229 = vld [vmem:[%s220 + $0x8] sm:$0xff]
      %v230 = vld [vmem:[%s220 + $0x10] sm:$0xff]
      %v231 = vld [vmem:[%s220 + $0x18] sm:$0xff]
      %v232 = vld [vmem:[%s220 + $0x20] sm:$0xff]
      %v233 = vld [vmem:[%s220 + $0x28] sm:$0xff]
      %v234 = vld [vmem:[%s220 + $0x30] sm:$0xff]
      %v235 = vld [vmem:[%s220 + $0x38] sm:$0xff]
      %v236 = vld [vmem:[%s220 + $0x40] sm:$0xff]
      %v237 = vld [vmem:[%s220 + $0x48] sm:$0xff]
      %v238 = vld [vmem:[%s220 + $0x50] sm:$0xff]
      %v239 = vld [vmem:[%s220 + $0x58] sm:$0xff]
      %v240 = vld [vmem:[%s220 + $0x60] sm:$0xff]
      %v241 = vld [vmem:[%s1] sm:$0xff]
      %v242 = vld [vmem:[%s2] sm:$0x3]
      %v244 = vlaneseq
      %v245 = vshrl.u32 %v244, 7
      %v246 = vsub.s32 0, %v245
      %v247 = vrot.slane %v242, %v246
      %v248 = vlaneseq
      %v249 = vshrl.u32 %v248, 7
      %v250 = vsub.s32 1, %v249
      %v251 = vrot.slane %v242, %v250
      %v255 = vcombine.high %v241, %v241
      %vm256 = vcmask 31744
      %v258 = vsel %vm256, %v228, 0
      %v261 = vsel %vm256, %v229, 0
      %v264 = vsel %vm256, %v230, 0
      %v267 = vsel %vm256, %v231, 0
      %v270 = vsel %vm256, %v232, 0
      %v273 = vsel %vm256, %v233, 0
      %v276 = vsel %vm256, %v234, 0
      %v279 = vsel %vm256, %v235, 0
      %v282 = vsel %vm256, %v236, 0
      %v285 = vsel %vm256, %v237, 0
      %v288 = vsel %vm256, %v238, 0
      %v291 = vsel %vm256, %v239, 0
      %v294 = vsel %vm256, %v240, 0
      %vm296 = vcmask 1043456
      %v297 = vsel %vm296, %v241, 0
      %v299 = vsel %vm296, %v255, 0
      %301 = vmatprep.subr.mxu0 %v299
      %302 = vmatpush1.msra.mxu0 %v297
      %303 = vmatprep.subr.mxu0 0.0
      %304 = vmatpush1.msra.mxu0 0.0
      %305 = vmatprep.subr.mxu0 0.0
      %306 = vmatpush1.msra.mxu0 0.0
      %307 = vmatprep.subr.mxu0 0.0
      %308 = vmatpush1.msra.mxu0 0.0
      %309 = vmatprep.subr.mxu0 0.0
      %310 = vmatpush1.msra.mxu0 0.0
      %311 = vmatprep.subr.mxu0 0.0
      %312 = vmatpush1.msra.mxu0 0.0
      %313 = vmatprep.subr.mxu0 0.0
      %314 = vmatpush1.msra.mxu0 0.0
      %315 = vmatprep.subr.mxu0 0.0
      %316 = vmatpush1.msra.mxu0 0.0
      %317 = vmatprep.subr.mxu0 0.0
      %318 = vmatpush1.msra.mxu0 0.0
      %319 = vmatprep.subr.mxu0 0.0
      %320 = vmatpush1.msra.mxu0 0.0
      %321 = vmatprep.subr.mxu0 0.0
      %322 = vmatpush1.msra.mxu0 0.0
      %323 = vmatprep.subr.mxu0 0.0
      %324 = vmatpush1.msra.mxu0 0.0
      %325 = vmatprep.subr.mxu0 0.0
      %326 = vmatpush1.msra.mxu0 0.0
      %327 = vmatprep.subr.mxu0 0.0
      %328 = vmatpush1.msra.mxu0 0.0
      %329 = vmatprep.subr.mxu0 0.0
      %330 = vmatpush1.msra.mxu0 0.0
      %331 = vmatprep.subr.mxu0 0.0
      %332 = vmatpush1.msra.mxu0 0.0
      %333 = vmatprep.subr.mxu0 0.0
      %334 = vmatpush1.msra.mxu0 0.0
      %335 = vmatprep.subr.mxu0 0.0
      %336 = vmatpush1.msra.mxu0 0.0
      %337 = vmatprep.subr.mxu0 0.0
      %338 = vmatpush1.msra.mxu0 0.0
      %339 = vmatprep.subr.mxu0 0.0
      %340 = vmatpush1.msra.mxu0 0.0
      %341 = vmatprep.subr.mxu0 0.0
      %342 = vmatpush1.msra.mxu0 0.0
      %343 = vmatprep.subr.mxu0 0.0
      %344 = vmatpush1.msra.mxu0 0.0
      %345 = vmatprep.subr.mxu0 0.0
      %346 = vmatpush1.msra.mxu0 0.0
      %347 = vmatprep.subr.mxu0 0.0
      %348 = vmatpush1.msra.mxu0 0.0
      %349 = vmatprep.subr.mxu0 0.0
      %350 = vmatpush1.msra.mxu0 0.0
      %351 = vmatprep.subr.mxu0 0.0
      %352 = vmatpush1.msra.mxu0 0.0
      %353 = vmatprep.subr.mxu0 0.0
      %354 = vmatpush1.msra.mxu0 0.0
      %355 = vmatprep.subr.mxu0 0.0
      %356 = vmatpush1.msra.mxu0 0.0
      %357 = vmatprep.subr.mxu0 0.0
      %358 = vmatpush1.msra.mxu0 0.0
      %359 = vmatprep.subr.mxu0 0.0
      %360 = vmatpush1.msra.mxu0 0.0
      %361 = vmatprep.subr.mxu0 0.0
      %362 = vmatpush1.msra.mxu0 0.0
      %363 = vmatprep.subr.mxu0 0.0
      %364 = vmatpush1.msra.mxu0 0.0
      %365 = vmatprep.mubr.f32.mxu0 0.0
      %366 = vmatmul.mubr.f32.gmra.mrb[0].mxu0 %v258
      %v367 = vpop.f32.mrb[0].mxu0
      %v368 = vadd.f32 %v247, %v367
      %v369 = vpop.f32.mrb[0].mxu0
      %v370 = vadd.f32 %v251, %v369
      %371 = vmatprep.mubr.f32.mxu0 0.0
      %372 = vmatmul.mubr.f32.gmra.mrb[0].mxu0 %v261
      %v373 = vpop.f32.mrb[0].mxu0
      %v374 = vadd.f32 %v247, %v373
      %v375 = vpop.f32.mrb[0].mxu0
      %v376 = vadd.f32 %v251, %v375
      %377 = vmatprep.mubr.f32.mxu0 0.0
      %378 = vmatmul.mubr.f32.gmra.mrb[0].mxu0 %v264
      %v379 = vpop.f32.mrb[0].mxu0
      %v380 = vadd.f32 %v247, %v379
      %v381 = vpop.f32.mrb[0].mxu0
      %v382 = vadd.f32 %v251, %v381
      %383 = vmatprep.mubr.f32.mxu0 0.0
      %384 = vmatmul.mubr.f32.gmra.mrb[0].mxu0 %v267
      %v385 = vpop.f32.mrb[0].mxu0
      %v386 = vadd.f32 %v247, %v385
      %v387 = vpop.f32.mrb[0].mxu0
      %v388 = vadd.f32 %v251, %v387
      %389 = vmatprep.mubr.f32.mxu0 0.0
      %390 = vmatmul.mubr.f32.gmra.mrb[0].mxu0 %v270
      %v391 = vpop.f32.mrb[0].mxu0
      %v392 = vadd.f32 %v247, %v391
      %v393 = vpop.f32.mrb[0].mxu0
      %v394 = vadd.f32 %v251, %v393
      %395 = vmatprep.mubr.f32.mxu0 0.0
      %396 = vmatmul.mubr.f32.gmra.mrb[0].mxu0 %v273
      %v397 = vpop.f32.mrb[0].mxu0
      %v398 = vadd.f32 %v247, %v397
      %v399 = vpop.f32.mrb[0].mxu0
      %v400 = vadd.f32 %v251, %v399
      %401 = vmatprep.mubr.f32.mxu0 0.0
      %402 = vmatmul.mubr.f32.gmra.mrb[0].mxu0 %v276
      %v403 = vpop.f32.mrb[0].mxu0
      %v404 = vadd.f32 %v247, %v403
      %v405 = vpop.f32.mrb[0].mxu0
      %v406 = vadd.f32 %v251, %v405
      %407 = vmatprep.mubr.f32.mxu0 0.0
      %408 = vmatmul.mubr.f32.gmra.mrb[0].mxu0 %v279
      %v409 = vpop.f32.mrb[0].mxu0
      %v410 = vadd.f32 %v247, %v409
      %v411 = vpop.f32.mrb[0].mxu0
      %v412 = vadd.f32 %v251, %v411
      %413 = vmatprep.mubr.f32.mxu0 0.0
      %414 = vmatmul.mubr.f32.gmra.mrb[0].mxu0 %v282
      %v415 = vpop.f32.mrb[0].mxu0
      %v416 = vadd.f32 %v247, %v415
      %v417 = vpop.f32.mrb[0].mxu0
      %v418 = vadd.f32 %v251, %v417
      %419 = vmatprep.mubr.f32.mxu0 0.0
      %420 = vmatmul.mubr.f32.gmra.mrb[0].mxu0 %v285
      %v421 = vpop.f32.mrb[0].mxu0
      %v422 = vadd.f32 %v247, %v421
      %v423 = vpop.f32.mrb[0].mxu0
      %v424 = vadd.f32 %v251, %v423
      %425 = vmatprep.mubr.f32.mxu0 0.0
      %426 = vmatmul.mubr.f32.gmra.mrb[0].mxu0 %v288
      %v427 = vpop.f32.mrb[0].mxu0
      %v428 = vadd.f32 %v247, %v427
      %v429 = vpop.f32.mrb[0].mxu0
      %v430 = vadd.f32 %v251, %v429
      %431 = vmatprep.mubr.f32.mxu0 0.0
      %432 = vmatmul.mubr.f32.gmra.mrb[0].mxu0 %v291
      %v433 = vpop.f32.mrb[0].mxu0
      %v434 = vadd.f32 %v247, %v433
      %v435 = vpop.f32.mrb[0].mxu0
      %v436 = vadd.f32 %v251, %v435
      %437 = vmatprep.mubr.f32.mxu0 0.0
      %438 = vmatmul.mubr.f32.gmra.mrb[0].mxu0 %v294
      %v439 = vpop.f32.mrb[0].mxu0
      %v440 = vadd.f32 %v247, %v439
      %v441 = vpop.f32.mrb[0].mxu0
      %v442 = vadd.f32 %v251, %v441
      %443 = vdwg.mxu0
      %v444 = vmul.f32 %v368, 0.01
      %v445 = vmul.f32 %v370, 0.01
      %v446 = vmul.f32 %v374, 0.01
      %v447 = vmul.f32 %v376, 0.01
      %v448 = vmul.f32 %v380, 0.01
      %v449 = vmul.f32 %v382, 0.01
      %v450 = vmul.f32 %v386, 0.01
      %v451 = vmul.f32 %v388, 0.01
      %v452 = vmul.f32 %v392, 0.01
      %v453 = vmul.f32 %v394, 0.01
      %v454 = vmul.f32 %v398, 0.01
      %v455 = vmul.f32 %v400, 0.01
      %v456 = vmul.f32 %v404, 0.01
      %v457 = vmul.f32 %v406, 0.01
      %v458 = vmul.f32 %v410, 0.01
      %v459 = vmul.f32 %v412, 0.01
      %v460 = vmul.f32 %v416, 0.01
      %v461 = vmul.f32 %v418, 0.01
      %v462 = vmul.f32 %v422, 0.01
      %v463 = vmul.f32 %v424, 0.01
      %v464 = vmul.f32 %v428, 0.01
      %v465 = vmul.f32 %v430, 0.01
      %v466 = vmul.f32 %v434, 0.01
      %v467 = vmul.f32 %v436, 0.01
      %v468 = vmul.f32 %v440, 0.01
      %v469 = vmul.f32 %v442, 0.01
      %v470 = vmax.f32 %v368, %v444
      %v471 = vmax.f32 %v370, %v445
      %v472 = vmax.f32 %v374, %v446
      %v473 = vmax.f32 %v376, %v447
      %v474 = vmax.f32 %v380, %v448
      %v475 = vmax.f32 %v382, %v449
      %v476 = vmax.f32 %v386, %v450
      %v477 = vmax.f32 %v388, %v451
      %v478 = vmax.f32 %v392, %v452
      %v479 = vmax.f32 %v394, %v453
      %v480 = vmax.f32 %v398, %v454
      %v481 = vmax.f32 %v400, %v455
      %v482 = vmax.f32 %v404, %v456
      %v483 = vmax.f32 %v406, %v457
      %v484 = vmax.f32 %v410, %v458
      %v485 = vmax.f32 %v412, %v459
      %v486 = vmax.f32 %v416, %v460
      %v487 = vmax.f32 %v418, %v461
      %v488 = vmax.f32 %v422, %v462
      %v489 = vmax.f32 %v424, %v463
      %v490 = vmax.f32 %v428, %v464
      %v491 = vmax.f32 %v430, %v465
      %v492 = vmax.f32 %v434, %v466
      %v493 = vmax.f32 %v436, %v467
      %v494 = vmax.f32 %v440, %v468
      %v495 = vmax.f32 %v442, %v469
      %v496 = vld [vmem:[%s3] sm:$0xff]
      %v497 = vld [vmem:[%s3 + $0x8] sm:$0xff]
      %v498 = vld [vmem:[%s3 + $0x10] sm:$0xff]
      %v499 = vld [vmem:[%s3 + $0x18] sm:$0xff]
      %v500 = vld [vmem:[%s3 + $0x20] sm:$0xff]
      %v501 = vld [vmem:[%s3 + $0x28] sm:$0xff]
      %v502 = vld [vmem:[%s3 + $0x30] sm:$0xff]
      %v503 = vld [vmem:[%s3 + $0x38] sm:$0xff]
      %v504 = vld [vmem:[%s3 + $0x40] sm:$0xff]
      %v505 = vld [vmem:[%s3 + $0x48] sm:$0xff]
      %v506 = vld [vmem:[%s3 + $0x50] sm:$0xff]
      %v507 = vld [vmem:[%s3 + $0x58] sm:$0xff]
      %v508 = vld [vmem:[%s3 + $0x60] sm:$0xff]
      %v509 = vld [vmem:[%s3 + $0x68] sm:$0xff]
      %v510 = vld [vmem:[%s3 + $0x70] sm:$0xff]
      %v511 = vld [vmem:[%s3 + $0x78] sm:$0xff]
      %v512 = vld [vmem:[%s3 + $0x80] sm:$0xff]
      %v513 = vld [vmem:[%s3 + $0x88] sm:$0xff]
      %v514 = vld [vmem:[%s3 + $0x90] sm:$0xff]
      %v515 = vld [vmem:[%s3 + $0x98] sm:$0xff]
      %v516 = vld [vmem:[%s3 + $0xa0] sm:$0xff]
      %v517 = vld [vmem:[%s3 + $0xa8] sm:$0xff]
      %v518 = vld [vmem:[%s3 + $0xb0] sm:$0xff]
      %v519 = vld [vmem:[%s3 + $0xb8] sm:$0xff]
      %v520 = vld [vmem:[%s3 + $0xc0] sm:$0xff]
      %v521 = vld [vmem:[%s3 + $0xc8] sm:$0xff]
      %v522 = vld [vmem:[%s3 + $0xd0] sm:$0xff]
      %v523 = vld [vmem:[%s3 + $0xd8] sm:$0xff]
      %v524 = vld [vmem:[%s3 + $0xe0] sm:$0xff]
      %v525 = vld [vmem:[%s3 + $0xe8] sm:$0xff]
      %v526 = vld [vmem:[%s3 + $0xf0] sm:$0xff]
      %v527 = vld [vmem:[%s3 + $0xf8] sm:$0xff]
      %v528 = vld [vmem:[%s4] sm:$0x1]
      %v530 = vlaneseq
      %v531 = vshrl.u32 %v530, 7
      %v532 = vsub.s32 0, %v531
      %v533 = vrot.slane %v528, %v532
      %535 = vmatprep.subr.mxu0 0.0
      %536 = vmatpush1.msra.mxu0 %v496
      %537 = vmatprep.subr.mxu0 0.0
      %538 = vmatpush1.msra.mxu0 %v497
      %539 = vmatprep.subr.mxu0 0.0
      %540 = vmatpush1.msra.mxu0 %v498
      %541 = vmatprep.subr.mxu0 0.0
      %542 = vmatpush1.msra.mxu0 %v499
      %543 = vmatprep.subr.mxu0 0.0
      %544 = vmatpush1.msra.mxu0 %v500
      %545 = vmatprep.subr.mxu0 0.0
      %546 = vmatpush1.msra.mxu0 %v501
      %547 = vmatprep.subr.mxu0 0.0
      %548 = vmatpush1.msra.mxu0 %v502
      %549 = vmatprep.subr.mxu0 0.0
      %550 = vmatpush1.msra.mxu0 %v503
      %551 = vmatprep.subr.mxu0 0.0
      %552 = vmatpush1.msra.mxu0 %v504
      %553 = vmatprep.subr.mxu0 0.0
      %554 = vmatpush1.msra.mxu0 %v505
      %555 = vmatprep.subr.mxu0 0.0
      %556 = vmatpush1.msra.mxu0 %v506
      %557 = vmatprep.subr.mxu0 0.0
      %558 = vmatpush1.msra.mxu0 %v507
      %559 = vmatprep.subr.mxu0 0.0
      %560 = vmatpush1.msra.mxu0 %v508
      %561 = vmatprep.subr.mxu0 0.0
      %562 = vmatpush1.msra.mxu0 %v509
      %563 = vmatprep.subr.mxu0 0.0
      %564 = vmatpush1.msra.mxu0 %v510
      %565 = vmatprep.subr.mxu0 0.0
      %566 = vmatpush1.msra.mxu0 %v511
      %567 = vmatprep.subr.mxu0 0.0
      %568 = vmatpush1.msra.mxu0 %v512
      %569 = vmatprep.subr.mxu0 0.0
      %570 = vmatpush1.msra.mxu0 %v513
      %571 = vmatprep.subr.mxu0 0.0
      %572 = vmatpush1.msra.mxu0 %v514
      %573 = vmatprep.subr.mxu0 0.0
      %574 = vmatpush1.msra.mxu0 %v515
      %575 = vmatprep.subr.mxu0 0.0
      %576 = vmatpush1.msra.mxu0 %v516
      %577 = vmatprep.subr.mxu0 0.0
      %578 = vmatpush1.msra.mxu0 %v517
      %579 = vmatprep.subr.mxu0 0.0
      %580 = vmatpush1.msra.mxu0 %v518
      %581 = vmatprep.subr.mxu0 0.0
      %582 = vmatpush1.msra.mxu0 %v519
      %583 = vmatprep.subr.mxu0 0.0
      %584 = vmatpush1.msra.mxu0 %v520
      %585 = vmatprep.subr.mxu0 0.0
      %586 = vmatpush1.msra.mxu0 %v521
      %587 = vmatprep.subr.mxu0 0.0
      %588 = vmatpush1.msra.mxu0 %v522
      %589 = vmatprep.subr.mxu0 0.0
      %590 = vmatpush1.msra.mxu0 %v523
      %591 = vmatprep.subr.mxu0 0.0
      %592 = vmatpush1.msra.mxu0 %v524
      %593 = vmatprep.subr.mxu0 0.0
      %594 = vmatpush1.msra.mxu0 %v525
      %595 = vmatprep.subr.mxu0 0.0
      %596 = vmatpush1.msra.mxu0 %v526
      %597 = vmatprep.subr.mxu0 0.0
      %598 = vmatpush1.msra.mxu0 %v527
      %599 = vmatprep.mubr.f32.mxu0 %v471
      %600 = vmatmul.mubr.f32.gmra.mrb[0].mxu0 %v470
      %v601 = vpop.f32.mrb[0].mxu0
      %v602 = vadd.f32 %v533, %v601
      %v603 = vpop.f32.mrb[0].mxu0
      %604 = vmatprep.mubr.f32.mxu0 %v473
      %605 = vmatmul.mubr.f32.gmra.mrb[0].mxu0 %v472
      %v606 = vpop.f32.mrb[0].mxu0
      %v607 = vadd.f32 %v533, %v606
      %v608 = vpop.f32.mrb[0].mxu0
      %609 = vmatprep.mubr.f32.mxu0 %v475
      %610 = vmatmul.mubr.f32.gmra.mrb[0].mxu0 %v474
      %v611 = vpop.f32.mrb[0].mxu0
      %v612 = vadd.f32 %v533, %v611
      %v613 = vpop.f32.mrb[0].mxu0
      %614 = vmatprep.mubr.f32.mxu0 %v477
      %615 = vmatmul.mubr.f32.gmra.mrb[0].mxu0 %v476
      %v616 = vpop.f32.mrb[0].mxu0
      %v617 = vadd.f32 %v533, %v616
      %v618 = vpop.f32.mrb[0].mxu0
      %619 = vmatprep.mubr.f32.mxu0 %v479
      %620 = vmatmul.mubr.f32.gmra.mrb[0].mxu0 %v478
      %v621 = vpop.f32.mrb[0].mxu0
      %v622 = vadd.f32 %v533, %v621
      %v623 = vpop.f32.mrb[0].mxu0
      %624 = vmatprep.mubr.f32.mxu0 %v481
      %625 = vmatmul.mubr.f32.gmra.mrb[0].mxu0 %v480
      %v626 = vpop.f32.mrb[0].mxu0
      %v627 = vadd.f32 %v533, %v626
      %v628 = vpop.f32.mrb[0].mxu0
      %629 = vmatprep.mubr.f32.mxu0 %v483
      %630 = vmatmul.mubr.f32.gmra.mrb[0].mxu0 %v482
      %v631 = vpop.f32.mrb[0].mxu0
      %v632 = vadd.f32 %v533, %v631
      %v633 = vpop.f32.mrb[0].mxu0
      %634 = vmatprep.mubr.f32.mxu0 %v485
      %635 = vmatmul.mubr.f32.gmra.mrb[0].mxu0 %v484
      %v636 = vpop.f32.mrb[0].mxu0
      %v637 = vadd.f32 %v533, %v636
      %v638 = vpop.f32.mrb[0].mxu0
      %639 = vmatprep.mubr.f32.mxu0 %v487
      %640 = vmatmul.mubr.f32.gmra.mrb[0].mxu0 %v486
      %v641 = vpop.f32.mrb[0].mxu0
      %v642 = vadd.f32 %v533, %v641
      %v643 = vpop.f32.mrb[0].mxu0
      %644 = vmatprep.mubr.f32.mxu0 %v489
      %645 = vmatmul.mubr.f32.gmra.mrb[0].mxu0 %v488
      %v646 = vpop.f32.mrb[0].mxu0
      %v647 = vadd.f32 %v533, %v646
      %v648 = vpop.f32.mrb[0].mxu0
      %649 = vmatprep.mubr.f32.mxu0 %v491
      %650 = vmatmul.mubr.f32.gmra.mrb[0].mxu0 %v490
      %v651 = vpop.f32.mrb[0].mxu0
      %v652 = vadd.f32 %v533, %v651
      %v653 = vpop.f32.mrb[0].mxu0
      %654 = vmatprep.mubr.f32.mxu0 %v493
      %655 = vmatmul.mubr.f32.gmra.mrb[0].mxu0 %v492
      %v656 = vpop.f32.mrb[0].mxu0
      %v657 = vadd.f32 %v533, %v656
      %v658 = vpop.f32.mrb[0].mxu0
      %659 = vmatprep.mubr.f32.mxu0 %v495
      %660 = vmatmul.mubr.f32.gmra.mrb[0].mxu0 %v494
      %v661 = vpop.f32.mrb[0].mxu0
      %v662 = vadd.f32 %v533, %v661
      %v663 = vpop.f32.mrb[0].mxu0
      %664 = vdwg.mxu0
      %vm665 = vcmask 261120
      %666 = vst.msk [vmem:[%s226] sm:$0xff] %vm665, %v602
      %667 = vst.msk [vmem:[%s226 + $0x8] sm:$0xff] %vm665, %v607
      %668 = vst.msk [vmem:[%s226 + $0x10] sm:$0xff] %vm665, %v612
      %669 = vst.msk [vmem:[%s226 + $0x18] sm:$0xff] %vm665, %v617
      %670 = vst.msk [vmem:[%s226 + $0x20] sm:$0xff] %vm665, %v622
      %671 = vst.msk [vmem:[%s226 + $0x28] sm:$0xff] %vm665, %v627
      %672 = vst.msk [vmem:[%s226 + $0x30] sm:$0xff] %vm665, %v632
      %673 = vst.msk [vmem:[%s226 + $0x38] sm:$0xff] %vm665, %v637
      %674 = vst.msk [vmem:[%s226 + $0x40] sm:$0xff] %vm665, %v642
      %675 = vst.msk [vmem:[%s226 + $0x48] sm:$0xff] %vm665, %v647
      %676 = vst.msk [vmem:[%s226 + $0x50] sm:$0xff] %vm665, %v652
      %677 = vst.msk [vmem:[%s226 + $0x58] sm:$0xff] %vm665, %v657
      %678 = vst.msk [vmem:[%s226 + $0x60] sm:$0xff] %vm665, %v662
      %s679 = smul.u32 13, %s16
      %p680 = scmp.lt.s32.totalorder %s679, 25
      %s681 = scalar_select %p680, %s679, 25
      %s682 = smul.addr %s681, 8
      %s683 = scalar_lea.vmem %s5, %s682
      // Predicated region
      $region41: #{tpu_custom_call.1} parent=39 // pred_check
        %p684 = pneg %p144
      $region42: #{tpu_custom_call.1} parent=39 // pred_check_branch
        %686 = sbr.rel (%p684) target = $region44
      $region43: #{tpu_custom_call.1} parent=39 // pred_region
        %s687 = smul.u32 13, %s16
      $region44: #{tpu_custom_call.1} parent=39 // pred_fallthru
        _
    $region40: #{tpu_custom_call.1} parent=5 // pred_fallthru
      _
    %p688 = scmp.le.s32.totalorder 2, %s11
    // Predicated region
    $region45: #{tpu_custom_call.1} parent=5 // pred_check
      %p689 = pneg %p688
    $region46: #{tpu_custom_call.1} parent=5 // pred_check_branch
      %691 = sbr.rel (%p689) target = $region48
    $region47: #{tpu_custom_call.1} parent=5 // pred_region
      %s692 = ssub.s32 %s11, 2
      // Predicated region
      $region49: #{tpu_custom_call.1} parent=47 // pred_check
        %p693 = pneg %p150
      $region50: #{tpu_custom_call.1} parent=47 // pred_check_branch
        %695 = sbr.rel (%p693) target = $region52
      $region51: #{tpu_custom_call.1} parent=47 // pred_region
        %s696 = smul.u32 13, %s17
        %p697 = scmp.lt.s32.totalorder %s696, 25
        %s698 = scalar_select %p697, %s696, 25
        %s699 = smul.addr %s698, 8
        %s700 = scalar_lea.vmem %s5, %s699
      $region52: #{tpu_custom_call.1} parent=47 // pred_fallthru
        _
    $region48: #{tpu_custom_call.1} parent=5 // pred_fallthru
      _
  $region6: #{tpu_custom_call.1} parent=0 // loop_footer
    %s15 = sadd.s32 1, %s11
  $region7: #{tpu_custom_call.1} parent=0 // loop_footer_branch
    %10 = sbr.rel target = $region3
  $region8: #{tpu_custom_call.1} parent=0 // loop_exit
    _

</llo_original>
